<compile_context>
chip_gen: v6e
topology: v6e:2x2x1
jax: 0.10.0
libtpu: 0.0.40
codegen_flags: <defaults>
</compile_context>

<pallas_src>
import jax
import jax.numpy as jnp
from jax import lax
from jax.experimental import pallas as pl
from jax.experimental.pallas import tpu as pltpu


def _cdiv(a: int, b: int) -> int:
    return (a + b - 1) // b


def _round_up(v: int, m: int) -> int:
    return _cdiv(v, m) * m


def _tpu_vmem_capacity_bytes() -> int:
    # Conservative (v7x-sized) fallback if the query is unavailable: a too-small answer
    # only shrinks tiles / the vmem request, it never overflows VMEM.
    try:
        info = pltpu.get_tpu_info()
        return int(getattr(info, "vmem_capacity_bytes", 64 << 20))
    except Exception:
        return 64 << 20


def _make_cls_linear_kernel(in_features: int, tk: int, mask_k: bool):
    def kernel(x_ref, w_ref, b_ref, o_ref, acc_ref):
        # x_ref: (1, tk), w_ref: (tn, tk), b_ref: (1, tn), o_ref: (1, tn), acc_ref: (1, tn) f32
        k = pl.program_id(1)

        @pl.when(k == 0)
        def _():
            acc_ref[...] = jnp.zeros_like(acc_ref)

        x = x_ref[...]
        w = w_ref[...]
        if mask_k:
            # Ragged last K block: zero OOB lanes of BOTH operands so garbage (possibly
            # NaN) reads cannot leak into the accumulation.
            lane = k * tk + lax.broadcasted_iota(jnp.int32, (1, tk), 1)
            valid = lane < in_features
            x = jnp.where(valid, x, 0).astype(x.dtype)
            w = jnp.where(valid, w, 0).astype(w.dtype)

        # Contract over IN directly from the natural (OUT, IN) weight layout; f32 MXU acc.
        acc_ref[...] += lax.dot_general(
            x, w,
            dimension_numbers=(((1,), (1,)), ((), ())),
            preferred_element_type=jnp.float32,
        )

        @pl.when(k == pl.num_programs(1) - 1)
        def _():
            o_ref[...] = (acc_ref[...] + b_ref[...].astype(jnp.float32)).astype(o_ref.dtype)

    return kernel


def ti_compatible_cls_linear(x, weight, bias):
    """x: any tensor with in_features elements. weight: (out, in). bias: (out,).

    Returns NCHW (1, out_features, 1, 1), matching the PyTorch module.
    """
    out_features, in_features = weight.shape
    out_dtype = x.dtype
    x2 = x.reshape(1, in_features)

    w_itemsize = jnp.dtype(weight.dtype).itemsize
    w_bytes = out_features * in_features * w_itemsize

    # Small heads: Pallas launch (~1-2 us) + grid-step overhead beats the W DMA time;
    # XLA's fused matvec handles them better.
    if w_bytes < (1 << 20):
        y = (x2.astype(jnp.float32) @ weight.astype(jnp.float32).T
             + bias.astype(jnp.float32))
        return y.astype(out_dtype).reshape(1, out_features, 1, 1)

    # Feed the MXU a single-dtype dot (deterministic lowering); accumulation stays f32.
    # TODO(synk): fp8 weights on v7x need a separate scale/dequant path, not a plain cast.
    if x2.dtype != weight.dtype:
        x2 = x2.astype(weight.dtype)
    x_itemsize = jnp.dtype(x2.dtype).itemsize
    bias2d = bias.reshape(1, out_features)

    # --- Generation-aware budgets ----------------------------------------------------
    vmem_phys = _tpu_vmem_capacity_bytes()
    two_tc = vmem_phys <= (64 << 20)                        # v7x-like: 64 MiB/TC, 2 TCs
    per_buf_budget = (8 << 20) if two_tc else (16 << 20)    # per double-buffered W tile
    vmem_cap = (32 << 20) if two_tc else (64 << 20)

    # --- Tile selection ----------------------------------------------------------------
    # K (IN) axis: keep the whole row resident if a 128-row W tile fits the budget,
    # otherwise tile IN lane-densely and accumulate across an "arbitrary" grid axis.
    row_bytes = in_features * w_itemsize
    if 128 * row_bytes <= per_buf_budget or in_features <= 128:
        tk = in_features
    else:
        tk = max(128, (per_buf_budget // (128 * w_itemsize)) // 128 * 128)
        tk = min(tk, (in_features // 128) * 128)
    nk = _cdiv(in_features, tk)
    mask_k = (nk > 1) and (in_features % tk != 0)

    # OUT axis: lane-dense multiple of 128, sized purely by the byte budget (no arbitrary
    # cap); the ragged last block is handled by masked boundary writes.
    if out_features <= 128:
        tn = out_features
    else:
        tn_max = (out_features // 128) * 128
        tn = max(128, (per_buf_budget // max(1, tk * w_itemsize)) // 128 * 128)
        tn = min(tn, tn_max)
        nj = _cdiv(out_features, tn)
        # Only split for parallelism on 2-TensorCore parts; target >=4 OUT tiles so each
        # core keeps a double-buffered W DMA. On 1-TC chips splitting is pure overhead.
        if two_tc and nj < 4 and tn_max >= 2 * 128:
            tn = min(tn, max(128, _round_up(_cdiv(out_features, 4), 128)))
    nj = _cdiv(out_features, tn)

    grid = (nj, nk)

    # --- Explicit scoped-VMEM request (double buffers + sublane-padded small tiles). ---
    b_itemsize = jnp.dtype(bias.dtype).itemsize
    o_itemsize = jnp.dtype(out_dtype).itemsize
    vmem_needed = (2 * tn * tk * w_itemsize            # W double buffer
                   + 2 * 8 * tk * x_itemsize           # x tiles
                   + 2 * 8 * tn * b_itemsize           # bias tiles
                   + 2 * 8 * tn * o_itemsize           # out tiles
                   + 8 * tn * 4)                       # f32 accumulator scratch
    vmem_limit = int(min(vmem_cap, max(16 << 20, vmem_needed + (2 << 20))))

    cost = pl.CostEstimate(
        flops=2 * out_features * in_features,
        transcendentals=0,
        bytes_accessed=(w_bytes
                        + nj * in_features * x_itemsize
                        + out_features * (b_itemsize + o_itemsize)),
    )

    kernel = _make_cls_linear_kernel(in_features, tk, mask_k)

    # TODO(synk): if this head is ever applied to a batch of vectors, pass x as
    # (B, in_features) and reuse each W tile across the batch to amortize the W DMA.
    # TODO(synk): optionally pre-transpose W once at init time to (IN, OUT) if
    # pl.lower_as_mlir shows Mosaic inserting an XLU relayout for the (OUT, IN) feed.
    out_2d = pl.pallas_call(
        kernel,
        out_shape=jax.ShapeDtypeStruct((1, out_features), out_dtype),
        grid=grid,
        in_specs=[
            pl.BlockSpec((1, tk), lambda j, k: (0, k)),        # x: resident / K-tiled
            pl.BlockSpec((tn, tk), lambda j, k: (j, k)),       # W: tiled over OUT (and IN)
            pl.BlockSpec((1, tn), lambda j, k: (0, j)),        # bias tile
        ],
        out_specs=pl.BlockSpec((1, tn), lambda j, k: (0, j)),  # lane-dense output tile
        scratch_shapes=[pltpu.VMEM((1, tn), jnp.float32)],     # f32 accumulator
        compiler_params=pltpu.CompilerParams(
            dimension_semantics=("parallel", "arbitrary"),
            vmem_limit_bytes=vmem_limit,
        ),
        cost_estimate=cost,
    )(x2, weight, bias2d)

    # Match PyTorch output layout NCHW (1, out_features, 1, 1).
    return out_2d.reshape(1, out_features, 1, 1)


if __name__ == "__main__":
    key = jax.random.PRNGKey(0)
    k_w, k_b, k_x, k_w2, k_x2 = jax.random.split(key, 5)

    # --- 1) f32 weights, ragged out_features (1000 % 128 != 0) -> Pallas path. ---
    in_f, out_f = 512, 1000
    w = jax.random.normal(k_w, (out_f, in_f), jnp.float32) * 0.05
    b = jax.random.normal(k_b, (out_f,), jnp.float32) * 0.05
    x = jax.random.normal(k_x, (1, in_f), jnp.float32)

    out = jax.block_until_ready(ti_compatible_cls_linear(x, w, b))
    ref = (x.reshape(1, in_f) @ w.T + b).reshape(1, out_f, 1, 1)
    assert out.shape == (1, out_f, 1, 1), out.shape
    assert jnp.allclose(out, ref, atol=1e-3, rtol=1e-3), "f32 mismatch vs reference"

    # --- 2) bf16 weights (half the HBM traffic), f32 accumulation -> Pallas path. ---
    in_f2, out_f2 = 1024, 1000
    w_bf = (jax.random.normal(k_w2, (out_f2, in_f2), jnp.float32) * 0.05).astype(jnp.bfloat16)
    bias_bf = jax.random.normal(k_b, (out_f2,), jnp.float32) * 0.05
    x_bf = jax.random.normal(k_x2, (1, in_f2), jnp.float32)

    out_bf = jax.block_until_ready(ti_compatible_cls_linear(x_bf, w_bf, bias_bf))
    ref_bf = (x_bf.astype(jnp.bfloat16).astype(jnp.float32)
              @ w_bf.astype(jnp.float32).T + bias_bf).reshape(1, out_f2, 1, 1)
    assert out_bf.shape == (1, out_f2, 1, 1), out_bf.shape
    assert jnp.allclose(out_bf, ref_bf, atol=5e-3, rtol=5e-3), "bf16 mismatch vs reference"

    # --- 3) Tiny head -> XLA bypass path (W << 1 MiB). ---
    w_t = jax.random.normal(k_w, (10, 32), jnp.float32) * 0.1
    b_t = jax.random.normal(k_b, (10,), jnp.float32) * 0.1
    x_t = jax.random.normal(k_x, (32,), jnp.float32)
    out_t = jax.block_until_ready(ti_compatible_cls_linear(x_t, w_t, b_t))
    ref_t = (x_t.reshape(1, 32) @ w_t.T + b_t).reshape(1, 10, 1, 1)
    assert jnp.allclose(out_t, ref_t, atol=1e-5, rtol=1e-5), "tiny-head mismatch"

    print("KERNEL_OK")
</pallas_src>

<mosaic_0001>
module attributes {stable_mosaic.version = 11 : i64} {
  func.func @kernel(%arg0: i32, %arg1: i32, %arg2: memref<1x512xf32, #tpu.memory_space<vmem>>, %arg3: memref<256x512xf32, #tpu.memory_space<vmem>>, %arg4: memref<1x256xf32, #tpu.memory_space<vmem>>, %arg5: memref<1x256xf32, #tpu.memory_space<vmem>>, %arg6: memref<1x256xf32, #tpu.memory_space<vmem>>) attributes {dimension_semantics = [#tpu.dimension_semantics<parallel>, #tpu.dimension_semantics<arbitrary>], iteration_bounds = array<i64: 4, 1>, scalar_prefetch = 0 : i64, scratch_operands = 1 : i64, tpu.core_type = #tpu.core_type<tc>, window_params = [{transform_indices = @transform_0, window_bounds = array<i64: 1, 512>}, {transform_indices = @transform_1, window_bounds = array<i64: 256, 512>}, {transform_indices = @transform_2, window_bounds = array<i64: 1, 256>}, {transform_indices = @transform_3, window_bounds = array<i64: 1, 256>}]} {
    %c0_i32 = arith.constant 0 : i32
    %0 = arith.cmpi eq, %arg1, %c0_i32 : i32
    %1 = arith.extui %0 : i1 to i32
    %c0_i32_0 = arith.constant 0 : i32
    %2 = arith.cmpi ne, %1, %c0_i32_0 : i32
    scf.if %2 {
      %cst_10 = arith.constant 0.000000e+00 : f32
      %12 = vector.broadcast %cst_10 : f32 to vector<1x256xf32>
      %c0_11 = arith.constant 0 : index
      %c0_12 = arith.constant 0 : index
      %13 = vector.load %arg6[%c0_11, %c0_12] : memref<1x256xf32, #tpu.memory_space<vmem>>, vector<1x256xf32>
      tpu.vector_store %arg6[%c0_11, %c0_12], %12 {strides = array<i32>} : memref<1x256xf32, #tpu.memory_space<vmem>>, vector<1x256xf32>,
    } else {
    }
    %c0 = arith.constant 0 : index
    %c0_1 = arith.constant 0 : index
    %3 = vector.load %arg2[%c0, %c0_1] : memref<1x512xf32, #tpu.memory_space<vmem>>, vector<1x512xf32>
    %c0_2 = arith.constant 0 : index
    %c0_3 = arith.constant 0 : index
    %4 = vector.load %arg3[%c0_2, %c0_3] : memref<256x512xf32, #tpu.memory_space<vmem>>, vector<256x512xf32>
    %c0_4 = arith.constant 0 : index
    %c0_5 = arith.constant 0 : index
    %5 = vector.load %arg6[%c0_4, %c0_5] : memref<1x256xf32, #tpu.memory_space<vmem>>, vector<1x256xf32>
    %cst = arith.constant dense<0.000000e+00> : vector<1x256xf32>
    %6 = tpu.matmul %3, %4, %cst {dimension_numbers = #tpu.dot_dimension_numbers<[1], [1], [0], [0], [0, 0, 1, 0], [], []>} : vector<1x512xf32>, vector<256x512xf32>, vector<1x256xf32> -> vector<1x256xf32>
    %7 = arith.addf %5, %6 : vector<1x256xf32>
    %c0_6 = arith.constant 0 : index
    %c0_7 = arith.constant 0 : index
    %8 = vector.load %arg6[%c0_6, %c0_7] : memref<1x256xf32, #tpu.memory_space<vmem>>, vector<1x256xf32>
    tpu.vector_store %arg6[%c0_6, %c0_7], %7 {strides = array<i32>} : memref<1x256xf32, #tpu.memory_space<vmem>>, vector<1x256xf32>,
    %c0_i32_8 = arith.constant 0 : i32
    %9 = arith.cmpi eq, %arg1, %c0_i32_8 : i32
    %10 = arith.extui %9 : i1 to i32
    %c0_i32_9 = arith.constant 0 : i32
    %11 = arith.cmpi ne, %10, %c0_i32_9 : i32
    scf.if %11 {
      %c0_10 = arith.constant 0 : index
      %c0_11 = arith.constant 0 : index
      %12 = vector.load %arg6[%c0_10, %c0_11] : memref<1x256xf32, #tpu.memory_space<vmem>>, vector<1x256xf32>
      %c0_12 = arith.constant 0 : index
      %c0_13 = arith.constant 0 : index
      %13 = vector.load %arg4[%c0_12, %c0_13] : memref<1x256xf32, #tpu.memory_space<vmem>>, vector<1x256xf32>
      %14 = arith.addf %12, %13 : vector<1x256xf32>
      %c0_14 = arith.constant 0 : index
      %c0_15 = arith.constant 0 : index
      %15 = vector.load %arg5[%c0_14, %c0_15] : memref<1x256xf32, #tpu.memory_space<vmem>>, vector<1x256xf32>
      tpu.vector_store %arg5[%c0_14, %c0_15], %14 {strides = array<i32>} : memref<1x256xf32, #tpu.memory_space<vmem>>, vector<1x256xf32>,
    } else {
    }
    return
  }
  func.func @transform_0(%arg0: i32, %arg1: i32) -> (i32, i32) {
    %c0_i32 = arith.constant 0 : i32
    %c0_i32_0 = arith.constant 0 : i32
    return %c0_i32, %arg1 : i32, i32
  }
  func.func @transform_1(%arg0: i32, %arg1: i32) -> (i32, i32) {
    %c0_i32 = arith.constant 0 : i32
    return %arg0, %arg1 : i32, i32
  }
  func.func @transform_2(%arg0: i32, %arg1: i32) -> (i32, i32) {
    %c0_i32 = arith.constant 0 : i32
    %c0_i32_0 = arith.constant 0 : i32
    return %c0_i32, %arg0 : i32, i32
  }
  func.func @transform_3(%arg0: i32, %arg1: i32) -> (i32, i32) {
    %c0_i32 = arith.constant 0 : i32
    %c0_i32_0 = arith.constant 0 : i32
    return %c0_i32, %arg0 : i32, i32
  }
}

</mosaic_0001>

<llo_original>
// kernel: tpu_custom_call.1
$region0: #{tpu_custom_call.1}
  #allocation0 [shape = 'u32[]', space=smem, size = 0x4, offset = 0x4, fixed_abs, tag = 'smem constant byte address 0x4 - core index']
  #allocation1 [shape = 'u32[144,128]{1,0:T(1,128)}', space=vmem, size = 0x12000, scoped, tag = 'internal scratch']
  #allocation2 [shape = 'f32[1,256]{1,0:T(1,128)}', space=vmem, size = 0x400, scoped, tag = 'scratch operand']
  %s0 = inlined_call_operand.hbm [shape: f32[1,512], index: 0, kind: input, shape index: {}]
  %s1 = inlined_call_operand.hbm [shape: f32[1000,512], index: 1, kind: input, shape index: {}]
  %s2 = inlined_call_operand.hbm [shape: f32[1,1000], index: 2, kind: input, shape index: {}]
  %s3 = inlined_call_operand.hbm [shape: f32[1,1000], index: 3, kind: output, shape index: {}]
  %s4 = sld [smem:[#allocation0]]
  $region65: #{tpu_custom_call.1} parent=0
    _
  %s6 = ssub.s32 1, %s4
  %s7 = scalar_select 0, %s6, %s4
  $region1: #{tpu_custom_call.1} parent=0
    #allocation3 [shape = 'u8[2048]{0}', space=vmem, size = 0x800, scoped, tag = 'input window, operand 0, single buffered']
    #allocation4 [shape = 's32[2]{0}', space=sflag, size = 0x8, scoped, tag = 'scoped memory for tpu_custom_call.1']
    #allocation5 [shape = 's32[2]{0}', space=sflag, size = 0x8, scoped, tag = 'scoped memory for tpu_custom_call.1']
    #allocation6 [shape = 'u8[1048576]{0}', space=vmem, size = 0x100000, scoped, tag = 'input window, operand 1']
    #allocation7 [shape = 's32[2]{0}', space=sflag, size = 0x8, scoped, tag = 'scoped memory for tpu_custom_call.1']
    #allocation8 [shape = 'u8[2048]{0}', space=vmem, size = 0x800, scoped, tag = 'input window, operand 2']
    #allocation9 [shape = 'u8[2048]{0}', space=vmem, size = 0x800, scoped, tag = 'output window, operand 0']
    %8 = vsyncpa [#allocation4], 0
    %9 = vsyncpa [#allocation7], 0
    %s10 = scalar_lea.sflag [#allocation7], 1
    %11 = vsyncpa %s10, 0
    %12 = vsyncpa [#allocation5], 0
    %s13 = scalar_lea.sflag [#allocation5], 1
    %14 = vsyncpa %s13, 0
    loop: start=0, step=1, limit=6
    $region2: #{tpu_custom_call.1} parent=1 // loop_pre_header
      _
    $region3: #{tpu_custom_call.1} parent=1 // loop_header
      %s16 = sphi 0, %s20
      %p17 = scmp.ge.s32.totalorder %s16, 6
      %s23 = sphi 0, %s35
      %s24 = sphi 0, %s31
      %s25 = sphi 0, %s23
      %s26 = sphi 0, %s24
      %s27 = sphi 0, %s25
      %s28 = sphi 0, %s26
      %s38 = sphi 0, %s40
      %s41 = sphi 0, %s38
      %s42 = sphi 0, %s41
      %s58 = sphi 0, %s42
      %s66 = sphi 0, %s68
      %s69 = sphi 0, %s66
      %s70 = sphi 0, %s69
      %s86 = sphi 0, %s70
      %s92 = sphi 0, %s94
      %s95 = sphi 0, %s92
      %s96 = sphi 0, %s95
      %s112 = sphi 0, %s96
      %s118 = sphi 0, %s120
      %s121 = sphi 0, %s118
      %s122 = sphi 0, %s121
      %s138 = sphi 0, %s122
    $region4: #{tpu_custom_call.1} parent=1 // loop_header_branch
      %19 = sbr.rel (%p17) target = $region8
    $region5: #{tpu_custom_call.1} parent=1 // loop_body
      %s21 = ssub.s32 %s16, 1
      %s22 = ssub.s32 %s16, 2
      %s29 = sadd.s32 1, %s24
      %p30 = scmp.ge.s32.totalorder %s29, 1
      %s31 = scalar_select %p30, 0, %s29
      %s32 = sadd.s32 1, %s23
      %s33 = scalar_select %p30, %s32, %s23
      %p34 = scmp.ge.s32.totalorder %s33, 4
      %s35 = scalar_select %p34, 0, %s33
      %s36 = ssub.s32 %s24, %s31
      %p37 = scmp.eq.s32.totalorder %s36, 0
      %s39 = sadd.s32 %s38, 1
      %s40 = scalar_select %p37, %s38, %s39
      %p43 = pneg %p37
      %p44 = scmp.eq.s32.totalorder %s16, 3
      %p45 = por %p43, %p44
      %p46 = scmp.ne.s32.totalorder %s38, %s41
      %p47 = scmp.eq.s32.totalorder %s16, 0
      %p48 = por %p46, %p47
      %p49 = scmp.ne.s32.totalorder %s38, %s41
      %p50 = scmp.eq.s32.totalorder %s21, 3
      %p51 = por %p49, %p50
      %p52 = scmp.ne.s32.totalorder %s41, %s42
      %p53 = scmp.eq.s32.totalorder %s21, 0
      %p54 = por %p52, %p53
      %p55 = scmp.ne.s32.totalorder %s41, %s42
      %p56 = scmp.eq.s32.totalorder %s22, 3
      %p57 = por %p55, %p56
      %p59 = scmp.ne.s32.totalorder %s42, %s58
      %p60 = scmp.eq.s32.totalorder %s22, 0
      %p61 = por %p59, %p60
      %s62 = ssub.s32 %s23, %s35
      %s63 = ssub.s32 %s24, %s31
      %s64 = sor.u32 %s62, %s63
      %p65 = scmp.eq.s32.totalorder %s64, 0
      %s67 = sadd.s32 %s66, 1
      %s68 = scalar_select %p65, %s66, %s67
      %p71 = pneg %p65
      %p72 = scmp.eq.s32.totalorder %s16, 3
      %p73 = por %p71, %p72
      %p74 = scmp.ne.s32.totalorder %s66, %s69
      %p75 = scmp.eq.s32.totalorder %s16, 0
      %p76 = por %p74, %p75
      %p77 = scmp.ne.s32.totalorder %s66, %s69
      %p78 = scmp.eq.s32.totalorder %s21, 3
      %p79 = por %p77, %p78
      %p80 = scmp.ne.s32.totalorder %s69, %s70
      %p81 = scmp.eq.s32.totalorder %s21, 0
      %p82 = por %p80, %p81
      %p83 = scmp.ne.s32.totalorder %s69, %s70
      %p84 = scmp.eq.s32.totalorder %s22, 3
      %p85 = por %p83, %p84
      %p87 = scmp.ne.s32.totalorder %s70, %s86
      %p88 = scmp.eq.s32.totalorder %s22, 0
      %p89 = por %p87, %p88
      %s90 = ssub.s32 %s23, %s35
      %p91 = scmp.eq.s32.totalorder %s90, 0
      %s93 = sadd.s32 %s92, 1
      %s94 = scalar_select %p91, %s92, %s93
      %p97 = pneg %p91
      %p98 = scmp.eq.s32.totalorder %s16, 3
      %p99 = por %p97, %p98
      %p100 = scmp.ne.s32.totalorder %s92, %s95
      %p101 = scmp.eq.s32.totalorder %s16, 0
      %p102 = por %p100, %p101
      %p103 = scmp.ne.s32.totalorder %s92, %s95
      %p104 = scmp.eq.s32.totalorder %s21, 3
      %p105 = por %p103, %p104
      %p106 = scmp.ne.s32.totalorder %s95, %s96
      %p107 = scmp.eq.s32.totalorder %s21, 0
      %p108 = por %p106, %p107
      %p109 = scmp.ne.s32.totalorder %s95, %s96
      %p110 = scmp.eq.s32.totalorder %s22, 3
      %p111 = por %p109, %p110
      %p113 = scmp.ne.s32.totalorder %s96, %s112
      %p114 = scmp.eq.s32.totalorder %s22, 0
      %p115 = por %p113, %p114
      %s116 = ssub.s32 %s23, %s35
      %p117 = scmp.eq.s32.totalorder %s116, 0
      %s119 = sadd.s32 %s118, 1
      %s120 = scalar_select %p117, %s118, %s119
      %p123 = pneg %p117
      %p124 = scmp.eq.s32.totalorder %s16, 3
      %p125 = por %p123, %p124
      %p126 = scmp.ne.s32.totalorder %s118, %s121
      %p127 = scmp.eq.s32.totalorder %s16, 0
      %p128 = por %p126, %p127
      %p129 = scmp.ne.s32.totalorder %s118, %s121
      %p130 = scmp.eq.s32.totalorder %s21, 3
      %p131 = por %p129, %p130
      %p132 = scmp.ne.s32.totalorder %s121, %s122
      %p133 = scmp.eq.s32.totalorder %s21, 0
      %p134 = por %p132, %p133
      %p135 = scmp.ne.s32.totalorder %s121, %s122
      %p136 = scmp.eq.s32.totalorder %s22, 3
      %p137 = por %p135, %p136
      %p139 = scmp.ne.s32.totalorder %s122, %s138
      %p140 = scmp.eq.s32.totalorder %s22, 0
      %p141 = por %p139, %p140
      %p142 = scmp.le.s32.totalorder 1, %s16
      %p143 = scmp.lt.s32.totalorder %s16, 5
      %p144 = pnand %p142, %p143
      %p145 = pneg %p144
      // Predicated region
      $region9: #{tpu_custom_call.1} parent=5 // pred_check
        _
      $region10: #{tpu_custom_call.1} parent=5 // pred_check_branch
        %147 = sbr.rel (%p144) target = $region12
      $region11: #{tpu_custom_call.1} parent=5 // pred_region
        %s148 = ssub.s32 %s16, 1
        // Predicated region
        $region13: #{tpu_custom_call.1} parent=11 // pred_check
          %p149 = pneg %p54
        $region14: #{tpu_custom_call.1} parent=11 // pred_check_branch
          %151 = sbr.rel (%p149) target = $region16
        $region15: #{tpu_custom_call.1} parent=11 // pred_region
          %s152 = smul.u32 4, %s26
          %s154 = ssub.s32 64, 64
          %155 = vsyncadd [#allocation4], %s154
          %s156 = smul.addr %s152, 16
          %s157 = scalar_lea.hbm %s0, %s156
          %s159 = sshll.u32 [#allocation3], 4
          %s160 = int_to_ptr.vmem [resolvable:$true] %s159
          %162 = dma.hbm_to_vmem [thread:$0]  %s157, 64, %s160, [#allocation4]
        $region16: #{tpu_custom_call.1} parent=11 // pred_fallthru
          _
      $region12: #{tpu_custom_call.1} parent=5 // pred_fallthru
        _
      %p163 = scmp.lt.s32.totalorder %s16, 4
      // Predicated region
      $region17: #{tpu_custom_call.1} parent=5 // pred_check
        %p164 = pneg %p163
      $region18: #{tpu_custom_call.1} parent=5 // pred_check_branch
        %166 = sbr.rel (%p164) target = $region20
      $region19: #{tpu_custom_call.1} parent=5 // pred_region
        // Predicated region
        $region21: #{tpu_custom_call.1} parent=19 // pred_check
          %p167 = pneg %p76
        $region22: #{tpu_custom_call.1} parent=19 // pred_check_branch
          %169 = sbr.rel (%p167) target = $region24
        $region23: #{tpu_custom_call.1} parent=19 // pred_region
          %s170 = sand.u32 %s16, 1
          %s171 = scalar_lea.sflag [#allocation7], %s170
          %s172 = sand.u32 %s66, 1
          %s173 = smul.addr %s172, 1024
          %s174 = scalar_lea.vmem [#allocation6], %s173
          %s175 = smul.u32 32, %s23
          %s176 = smul.u32 4, %s24
          %s177 = ssub.s32 125, %s175
          %p178 = scmp.lt.s32.totalorder %s177, 32
          %s179 = scalar_select %p178, %s177, 32
          %s180 = smul.u32 128, %s179
          %s181 = smul.u32 %s180, 4
          %s183 = ssub.s32 16384, %s181
          %184 = vsyncadd %s171, %s183
          %p185 = scmp.ne.s32.totalorder 0, %s181
          %s186 = smul.addr %s175, 4
          %s187 = sadd.s32 %s176, %s186
          %s188 = smul.addr %s187, 128
          %s189 = scalar_lea.hbm %s1, %s188
          %s190 = smul.u32 32, %s179
          %s191 = sshll.u32 %s174, 4
          %s192 = int_to_ptr.vmem [resolvable:$true] %s191
          %s193 = sshll.u32 %s190, 4
          %197 = dma.hbm_to_vmem [thread:$0]  (%p185), %s189, %s193, %s192, %s171, 512, 512, 32
        $region24: #{tpu_custom_call.1} parent=19 // pred_fallthru
          _
        // Predicated region
        $region25: #{tpu_custom_call.1} parent=19 // pred_check
          %p198 = pneg %p102
        $region26: #{tpu_custom_call.1} parent=19 // pred_check_branch
          %200 = sbr.rel (%p198) target = $region28
        $region27: #{tpu_custom_call.1} parent=19 // pred_region
          %s201 = sand.u32 %s16, 1
          %s202 = scalar_lea.sflag [#allocation7], %s201
          %s203 = sand.u32 %s92, 1
          %s204 = smul.addr %s203, 2
          %s205 = scalar_lea.vmem [#allocation8], %s204
          %s206 = smul.u32 2, %s23
          %s208 = ssub.s32 32, 32
          %209 = vsyncadd %s202, %s208
          %s210 = smul.addr %s206, 16
          %s211 = scalar_lea.hbm %s2, %s210
          %s213 = sshll.u32 %s205, 4
          %s214 = int_to_ptr.vmem [resolvable:$true] %s213
          %216 = dma.hbm_to_vmem [thread:$0]  %s211, 32, %s214, %s202
        $region28: #{tpu_custom_call.1} parent=19 // pred_fallthru
          _
      $region20: #{tpu_custom_call.1} parent=5 // pred_fallthru
        _
      %p217 = scmp.le.s32.totalorder 1, %s16
      %p218 = scmp.lt.s32.totalorder %s16, 5
      %p219 = pnand %p217, %p218
      %p220 = pneg %p219
      // Predicated region
      $region29: #{tpu_custom_call.1} parent=5 // pred_check
        _
      $region30: #{tpu_custom_call.1} parent=5 // pred_check_branch
        %222 = sbr.rel (%p219) target = $region32
      $region31: #{tpu_custom_call.1} parent=5 // pred_region
        %s223 = ssub.s32 %s16, 1
        // Predicated region
        $region33: #{tpu_custom_call.1} parent=31 // pred_check
          %p224 = pneg %p54
        $region34: #{tpu_custom_call.1} parent=31 // pred_check_branch
          %226 = sbr.rel (%p224) target = $region36
        $region35: #{tpu_custom_call.1} parent=31 // pred_region
          %227 = dma.done [#allocation4], 64
        $region36: #{tpu_custom_call.1} parent=31 // pred_fallthru
          _
        %s228 = sand.u32 %s21, 1
        %s229 = scalar_lea.sflag [#allocation7], %s228
        %s230 = sand.u32 %s69, 1
        %s231 = smul.addr %s230, 1024
        %s232 = scalar_lea.vmem [#allocation6], %s231
        // Predicated region
        $region37: #{tpu_custom_call.1} parent=31 // pred_check
          %p233 = pneg %p82
        $region38: #{tpu_custom_call.1} parent=31 // pred_check_branch
          %235 = sbr.rel (%p233) target = $region40
        $region39: #{tpu_custom_call.1} parent=31 // pred_region
          %236 = dma.done %s229, 16384
        $region40: #{tpu_custom_call.1} parent=31 // pred_fallthru
          _
        %s237 = sand.u32 %s21, 1
        %s238 = scalar_lea.sflag [#allocation7], %s237
        %s239 = sand.u32 %s95, 1
        %s240 = smul.addr %s239, 2
        %s241 = scalar_lea.vmem [#allocation8], %s240
        // Predicated region
        $region41: #{tpu_custom_call.1} parent=31 // pred_check
          %p242 = pneg %p108
        $region42: #{tpu_custom_call.1} parent=31 // pred_check_branch
          %244 = sbr.rel (%p242) target = $region44
        $region43: #{tpu_custom_call.1} parent=31 // pred_region
          %245 = dma.done %s238, 32
        $region44: #{tpu_custom_call.1} parent=31 // pred_fallthru
          _
        %p246 = pneg %p54
        %p247 = pneg %p51
        %s248 = sand.u32 %s21, 1
        %s249 = scalar_lea.sflag [#allocation7], %s248
        %s250 = sand.u32 %s69, 1
        %s251 = smul.addr %s250, 1024
        %s252 = scalar_lea.vmem [#allocation6], %s251
        %p253 = pneg %p82
        %p254 = pneg %p79
        %s255 = sand.u32 %s21, 1
        %s256 = scalar_lea.sflag [#allocation7], %s255
        %s257 = sand.u32 %s95, 1
        %s258 = smul.addr %s257, 2
        %s259 = scalar_lea.vmem [#allocation8], %s258
        %p260 = pneg %p108
        %p261 = pneg %p105
        %p262 = pneg %p134
        %p263 = pneg %p131
        %s264 = sand.u32 %s121, 1
        %s265 = scalar_lea.sflag [#allocation5], %s264
        %s266 = sand.u32 %s121, 1
        %s267 = smul.addr %s266, 2
        %s268 = scalar_lea.vmem [#allocation9], %s267
        %s269 = smul.u32 4, %s26
        %s270 = smul.u32 32, %s25
        %s271 = smul.u32 4, %s26
        %s272 = ssub.s32 125, %s270
        %p273 = scmp.lt.s32.totalorder %s272, 32
        %s274 = scalar_select %p273, %s272, 32
        %s275 = smul.u32 128, %s274
        %s276 = smul.u32 %s275, 4
        %s277 = smul.u32 2, %s25
        %s278 = smul.u32 2, %s25
        %p279 = scmp.eq.s32.totalorder %s26, 0
        // Predicated region
        $region45: #{tpu_custom_call.1} parent=31 // pred_check
          %p280 = pneg %p279
        $region46: #{tpu_custom_call.1} parent=31 // pred_check_branch
          %282 = sbr.rel (%p280) target = $region48
        $region47: #{tpu_custom_call.1} parent=31 // pred_region
          %v283 = vlaneseq
          %vm284 = vcmp.ge.s32.totalorder %v283, 0
          %vm285 = vcmp.lt.s32.totalorder %v283, 256
          %vm286 = vmand %vm284, %vm285
          %287 = vst.msk [vmem:[#allocation2] sm:$0x3] %vm286, 0.0
        $region48: #{tpu_custom_call.1} parent=31 // pred_fallthru
          _
        %v288 = vld [vmem:[#allocation3] sm:$0xf]
        %v289 = vld [vmem:[%s232] sm:$0xff]
        %v290 = vld [vmem:[%s232 + $0x8] sm:$0xff]
        %v291 = vld [vmem:[%s232 + $0x10] sm:$0xff]
        %v292 = vld [vmem:[%s232 + $0x18] sm:$0xff]
        %v293 = vld [vmem:[%s232 + $0x20] sm:$0xff]
        %v294 = vld [vmem:[%s232 + $0x28] sm:$0xff]
        %v295 = vld [vmem:[%s232 + $0x30] sm:$0xff]
        %v296 = vld [vmem:[%s232 + $0x38] sm:$0xff]
        %v297 = vld [vmem:[%s232 + $0x40] sm:$0xff]
        %v298 = vld [vmem:[%s232 + $0x48] sm:$0xff]
        %v299 = vld [vmem:[%s232 + $0x50] sm:$0xff]
        %v300 = vld [vmem:[%s232 + $0x58] sm:$0xff]
        %v301 = vld [vmem:[%s232 + $0x60] sm:$0xff]
        %v302 = vld [vmem:[%s232 + $0x68] sm:$0xff]
        %v303 = vld [vmem:[%s232 + $0x70] sm:$0xff]
        %v304 = vld [vmem:[%s232 + $0x78] sm:$0xff]
        %v305 = vld [vmem:[%s232 + $0x80] sm:$0xff]
        %v306 = vld [vmem:[%s232 + $0x88] sm:$0xff]
        %v307 = vld [vmem:[%s232 + $0x90] sm:$0xff]
        %v308 = vld [vmem:[%s232 + $0x98] sm:$0xff]
        %v309 = vld [vmem:[%s232 + $0xa0] sm:$0xff]
        %v310 = vld [vmem:[%s232 + $0xa8] sm:$0xff]
        %v311 = vld [vmem:[%s232 + $0xb0] sm:$0xff]
        %v312 = vld [vmem:[%s232 + $0xb8] sm:$0xff]
        %v313 = vld [vmem:[%s232 + $0xc0] sm:$0xff]
        %v314 = vld [vmem:[%s232 + $0xc8] sm:$0xff]
        %v315 = vld [vmem:[%s232 + $0xd0] sm:$0xff]
        %v316 = vld [vmem:[%s232 + $0xd8] sm:$0xff]
        %v317 = vld [vmem:[%s232 + $0xe0] sm:$0xff]
        %v318 = vld [vmem:[%s232 + $0xe8] sm:$0xff]
        %v319 = vld [vmem:[%s232 + $0xf0] sm:$0xff]
        %v320 = vld [vmem:[%s232 + $0xf8] sm:$0xff]
        %v321 = vld [vmem:[%s232 + $0x100] sm:$0xff]
        %v322 = vld [vmem:[%s232 + $0x108] sm:$0xff]
        %v323 = vld [vmem:[%s232 + $0x110] sm:$0xff]
        %v324 = vld [vmem:[%s232 + $0x118] sm:$0xff]
        %v325 = vld [vmem:[%s232 + $0x120] sm:$0xff]
        %v326 = vld [vmem:[%s232 + $0x128] sm:$0xff]
        %v327 = vld [vmem:[%s232 + $0x130] sm:$0xff]
        %v328 = vld [vmem:[%s232 + $0x138] sm:$0xff]
        %v329 = vld [vmem:[%s232 + $0x140] sm:$0xff]
        %v330 = vld [vmem:[%s232 + $0x148] sm:$0xff]
        %v331 = vld [vmem:[%s232 + $0x150] sm:$0xff]
        %v332 = vld [vmem:[%s232 + $0x158] sm:$0xff]
        %v333 = vld [vmem:[%s232 + $0x160] sm:$0xff]
        %v334 = vld [vmem:[%s232 + $0x168] sm:$0xff]
        %v335 = vld [vmem:[%s232 + $0x170] sm:$0xff]
        %v336 = vld [vmem:[%s232 + $0x178] sm:$0xff]
        %v337 = vld [vmem:[%s232 + $0x180] sm:$0xff]
        %v338 = vld [vmem:[%s232 + $0x188] sm:$0xff]
        %v339 = vld [vmem:[%s232 + $0x190] sm:$0xff]
        %v340 = vld [vmem:[%s232 + $0x198] sm:$0xff]
        %v341 = vld [vmem:[%s232 + $0x1a0] sm:$0xff]
        %v342 = vld [vmem:[%s232 + $0x1a8] sm:$0xff]
        %v343 = vld [vmem:[%s232 + $0x1b0] sm:$0xff]
        %v344 = vld [vmem:[%s232 + $0x1b8] sm:$0xff]
        %v345 = vld [vmem:[%s232 + $0x1c0] sm:$0xff]
        %v346 = vld [vmem:[%s232 + $0x1c8] sm:$0xff]
        %v347 = vld [vmem:[%s232 + $0x1d0] sm:$0xff]
        %v348 = vld [vmem:[%s232 + $0x1d8] sm:$0xff]
        %v349 = vld [vmem:[%s232 + $0x1e0] sm:$0xff]
        %v350 = vld [vmem:[%s232 + $0x1e8] sm:$0xff]
        %v351 = vld [vmem:[%s232 + $0x1f0] sm:$0xff]
        %v352 = vld [vmem:[%s232 + $0x1f8] sm:$0xff]
        %v353 = vld [vmem:[%s232 + $0x200] sm:$0xff]
        %v354 = vld [vmem:[%s232 + $0x208] sm:$0xff]
        %v355 = vld [vmem:[%s232 + $0x210] sm:$0xff]
        %v356 = vld [vmem:[%s232 + $0x218] sm:$0xff]
        %v357 = vld [vmem:[%s232 + $0x220] sm:$0xff]
        %v358 = vld [vmem:[%s232 + $0x228] sm:$0xff]
        %v359 = vld [vmem:[%s232 + $0x230] sm:$0xff]
        %v360 = vld [vmem:[%s232 + $0x238] sm:$0xff]
        %v361 = vld [vmem:[%s232 + $0x240] sm:$0xff]
        %v362 = vld [vmem:[%s232 + $0x248] sm:$0xff]
        %v363 = vld [vmem:[%s232 + $0x250] sm:$0xff]
        %v364 = vld [vmem:[%s232 + $0x258] sm:$0xff]
        %v365 = vld [vmem:[%s232 + $0x260] sm:$0xff]
        %v366 = vld [vmem:[%s232 + $0x268] sm:$0xff]
        %v367 = vld [vmem:[%s232 + $0x270] sm:$0xff]
        %v368 = vld [vmem:[%s232 + $0x278] sm:$0xff]
        %v369 = vld [vmem:[%s232 + $0x280] sm:$0xff]
        %v370 = vld [vmem:[%s232 + $0x288] sm:$0xff]
        %v371 = vld [vmem:[%s232 + $0x290] sm:$0xff]
        %v372 = vld [vmem:[%s232 + $0x298] sm:$0xff]
        %v373 = vld [vmem:[%s232 + $0x2a0] sm:$0xff]
        %v374 = vld [vmem:[%s232 + $0x2a8] sm:$0xff]
        %v375 = vld [vmem:[%s232 + $0x2b0] sm:$0xff]
        %v376 = vld [vmem:[%s232 + $0x2b8] sm:$0xff]
        %v377 = vld [vmem:[%s232 + $0x2c0] sm:$0xff]
        %v378 = vld [vmem:[%s232 + $0x2c8] sm:$0xff]
        %v379 = vld [vmem:[%s232 + $0x2d0] sm:$0xff]
        %v380 = vld [vmem:[%s232 + $0x2d8] sm:$0xff]
        %v381 = vld [vmem:[%s232 + $0x2e0] sm:$0xff]
        %v382 = vld [vmem:[%s232 + $0x2e8] sm:$0xff]
        %v383 = vld [vmem:[%s232 + $0x2f0] sm:$0xff]
        %v384 = vld [vmem:[%s232 + $0x2f8] sm:$0xff]
        %v385 = vld [vmem:[%s232 + $0x300] sm:$0xff]
        %v386 = vld [vmem:[%s232 + $0x308] sm:$0xff]
        %v387 = vld [vmem:[%s232 + $0x310] sm:$0xff]
        %v388 = vld [vmem:[%s232 + $0x318] sm:$0xff]
        %v389 = vld [vmem:[%s232 + $0x320] sm:$0xff]
        %v390 = vld [vmem:[%s232 + $0x328] sm:$0xff]
        %v391 = vld [vmem:[%s232 + $0x330] sm:$0xff]
        %v392 = vld [vmem:[%s232 + $0x338] sm:$0xff]
        %v393 = vld [vmem:[%s232 + $0x340] sm:$0xff]
        %v394 = vld [vmem:[%s232 + $0x348] sm:$0xff]
        %v395 = vld [vmem:[%s232 + $0x350] sm:$0xff]
        %v396 = vld [vmem:[%s232 + $0x358] sm:$0xff]
        %v397 = vld [vmem:[%s232 + $0x360] sm:$0xff]
        %v398 = vld [vmem:[%s232 + $0x368] sm:$0xff]
        %v399 = vld [vmem:[%s232 + $0x370] sm:$0xff]
        %v400 = vld [vmem:[%s232 + $0x378] sm:$0xff]
        %v401 = vld [vmem:[%s232 + $0x380] sm:$0xff]
        %v402 = vld [vmem:[%s232 + $0x388] sm:$0xff]
        %v403 = vld [vmem:[%s232 + $0x390] sm:$0xff]
        %v404 = vld [vmem:[%s232 + $0x398] sm:$0xff]
        %v405 = vld [vmem:[%s232 + $0x3a0] sm:$0xff]
        %v406 = vld [vmem:[%s232 + $0x3a8] sm:$0xff]
        %v407 = vld [vmem:[%s232 + $0x3b0] sm:$0xff]
        %v408 = vld [vmem:[%s232 + $0x3b8] sm:$0xff]
        %v409 = vld [vmem:[%s232 + $0x3c0] sm:$0xff]
        %v410 = vld [vmem:[%s232 + $0x3c8] sm:$0xff]
        %v411 = vld [vmem:[%s232 + $0x3d0] sm:$0xff]
        %v412 = vld [vmem:[%s232 + $0x3d8] sm:$0xff]
        %v413 = vld [vmem:[%s232 + $0x3e0] sm:$0xff]
        %v414 = vld [vmem:[%s232 + $0x3e8] sm:$0xff]
        %v415 = vld [vmem:[%s232 + $0x3f0] sm:$0xff]
        %v416 = vld [vmem:[%s232 + $0x3f8] sm:$0xff]
        %v417 = vld [vmem:[#allocation2] sm:$0x3]
        %v419 = vlaneseq
        %v420 = vshrl.u32 %v419, 7
        %v421 = vsub.s32 0, %v420
        %v422 = vrot.slane %v288, %v421
        %v423 = vlaneseq
        %v424 = vshrl.u32 %v423, 7
        %v425 = vsub.s32 1, %v424
        %v426 = vrot.slane %v288, %v425
        %v427 = vlaneseq
        %v428 = vshrl.u32 %v427, 7
        %v429 = vsub.s32 2, %v428
        %v430 = vrot.slane %v288, %v429
        %v431 = vlaneseq
        %v432 = vshrl.u32 %v431, 7
        %v433 = vsub.s32 3, %v432
        %v434 = vrot.slane %v288, %v433
        %439 = vmatprep.subr.mxu0 %v350
        %440 = vmatpush1.xpose.msra.mxu0 %v349
        %441 = vmatprep.subr.mxu0 %v346
        %442 = vmatpush1.xpose.msra.mxu0 %v345
        %443 = vmatprep.subr.mxu0 %v342
        %444 = vmatpush1.xpose.msra.mxu0 %v341
        %445 = vmatprep.subr.mxu0 %v338
        %446 = vmatpush1.xpose.msra.mxu0 %v337
        %447 = vmatprep.subr.mxu0 %v334
        %448 = vmatpush1.xpose.msra.mxu0 %v333
        %449 = vmatprep.subr.mxu0 %v330
        %450 = vmatpush1.xpose.msra.mxu0 %v329
        %451 = vmatprep.subr.mxu0 %v326
        %452 = vmatpush1.xpose.msra.mxu0 %v325
        %453 = vmatprep.subr.mxu0 %v322
        %454 = vmatpush1.xpose.msra.mxu0 %v321
        %455 = vmatprep.subr.mxu0 %v318
        %456 = vmatpush1.xpose.msra.mxu0 %v317
        %457 = vmatprep.subr.mxu0 %v314
        %458 = vmatpush1.xpose.msra.mxu0 %v313
        %459 = vmatprep.subr.mxu0 %v310
        %460 = vmatpush1.xpose.msra.mxu0 %v309
        %461 = vmatprep.subr.mxu0 %v306
        %462 = vmatpush1.xpose.msra.mxu0 %v305
        %463 = vmatprep.subr.mxu0 %v302
        %464 = vmatpush1.xpose.msra.mxu0 %v301
        %465 = vmatprep.subr.mxu0 %v298
        %466 = vmatpush1.xpose.msra.mxu0 %v297
        %467 = vmatprep.subr.mxu0 %v294
        %468 = vmatpush1.xpose.msra.mxu0 %v293
        %469 = vmatprep.subr.mxu0 %v290
        %470 = vmatpush1.xpose.msra.mxu0 %v289
        %471 = vmatprep.subr.mxu0 %v414
        %472 = vmatpush2.xpose.msra.mxu0 %v413
        %473 = vmatprep.subr.mxu0 %v410
        %474 = vmatpush2.xpose.msra.mxu0 %v409
        %475 = vmatprep.subr.mxu0 %v406
        %476 = vmatpush2.xpose.msra.mxu0 %v405
        %477 = vmatprep.subr.mxu0 %v402
        %478 = vmatpush2.xpose.msra.mxu0 %v401
        %479 = vmatprep.subr.mxu0 %v398
        %480 = vmatpush2.xpose.msra.mxu0 %v397
        %481 = vmatprep.subr.mxu0 %v394
        %482 = vmatpush2.xpose.msra.mxu0 %v393
        %483 = vmatprep.subr.mxu0 %v390
        %484 = vmatpush2.xpose.msra.mxu0 %v389
        %485 = vmatprep.subr.mxu0 %v386
        %486 = vmatpush2.xpose.msra.mxu0 %v385
        %487 = vmatprep.subr.mxu0 %v382
        %488 = vmatpush2.xpose.msra.mxu0 %v381
        %489 = vmatprep.subr.mxu0 %v378
        %490 = vmatpush2.xpose.msra.mxu0 %v377
        %491 = vmatprep.subr.mxu0 %v374
        %492 = vmatpush2.xpose.msra.mxu0 %v373
        %493 = vmatprep.subr.mxu0 %v370
        %494 = vmatpush2.xpose.msra.mxu0 %v369
        %495 = vmatprep.subr.mxu0 %v366
        %496 = vmatpush2.xpose.msra.mxu0 %v365
        %497 = vmatprep.subr.mxu0 %v362
        %498 = vmatpush2.xpose.msra.mxu0 %v361
        %499 = vmatprep.subr.mxu0 %v358
        %500 = vmatpush2.xpose.msra.mxu0 %v357
        %501 = vmatprep.subr.mxu0 %v354
        %502 = vmatpush2.xpose.msra.mxu0 %v353
        %503 = vmatprep.mubr.f32.mxu0 %v426
        %504 = vmatmul.mubr.f32.gmra.mxu0 %v422
        %v505 = vpop.f32.mrf.mxu0
        %v506 = vadd.f32 0.0, %v505
        %v507 = vpop.f32.mrf.mxu0
        %v508 = vadd.f32 0.0, %v507
        %509 = vdwg.mxu0
        %510 = vmatprep.subr.mxu0 %v352
        %511 = vmatpush1.xpose.msra.mxu0 %v351
        %512 = vmatprep.subr.mxu0 %v348
        %513 = vmatpush1.xpose.msra.mxu0 %v347
        %514 = vmatprep.subr.mxu0 %v344
        %515 = vmatpush1.xpose.msra.mxu0 %v343
        %516 = vmatprep.subr.mxu0 %v340
        %517 = vmatpush1.xpose.msra.mxu0 %v339
        %518 = vmatprep.subr.mxu0 %v336
        %519 = vmatpush1.xpose.msra.mxu0 %v335
        %520 = vmatprep.subr.mxu0 %v332
        %521 = vmatpush1.xpose.msra.mxu0 %v331
        %522 = vmatprep.subr.mxu0 %v328
        %523 = vmatpush1.xpose.msra.mxu0 %v327
        %524 = vmatprep.subr.mxu0 %v324
        %525 = vmatpush1.xpose.msra.mxu0 %v323
        %526 = vmatprep.subr.mxu0 %v320
        %527 = vmatpush1.xpose.msra.mxu0 %v319
        %528 = vmatprep.subr.mxu0 %v316
        %529 = vmatpush1.xpose.msra.mxu0 %v315
        %530 = vmatprep.subr.mxu0 %v312
        %531 = vmatpush1.xpose.msra.mxu0 %v311
        %532 = vmatprep.subr.mxu0 %v308
        %533 = vmatpush1.xpose.msra.mxu0 %v307
        %534 = vmatprep.subr.mxu0 %v304
        %535 = vmatpush1.xpose.msra.mxu0 %v303
        %536 = vmatprep.subr.mxu0 %v300
        %537 = vmatpush1.xpose.msra.mxu0 %v299
        %538 = vmatprep.subr.mxu0 %v296
        %539 = vmatpush1.xpose.msra.mxu0 %v295
        %540 = vmatprep.subr.mxu0 %v292
        %541 = vmatpush1.xpose.msra.mxu0 %v291
        %542 = vmatprep.subr.mxu0 %v416
        %543 = vmatpush2.xpose.msra.mxu0 %v415
        %544 = vmatprep.subr.mxu0 %v412
        %545 = vmatpush2.xpose.msra.mxu0 %v411
        %546 = vmatprep.subr.mxu0 %v408
        %547 = vmatpush2.xpose.msra.mxu0 %v407
        %548 = vmatprep.subr.mxu0 %v404
        %549 = vmatpush2.xpose.msra.mxu0 %v403
        %550 = vmatprep.subr.mxu0 %v400
        %551 = vmatpush2.xpose.msra.mxu0 %v399
        %552 = vmatprep.subr.mxu0 %v396
        %553 = vmatpush2.xpose.msra.mxu0 %v395
        %554 = vmatprep.subr.mxu0 %v392
        %555 = vmatpush2.xpose.msra.mxu0 %v391
        %556 = vmatprep.subr.mxu0 %v388
        %557 = vmatpush2.xpose.msra.mxu0 %v387
        %558 = vmatprep.subr.mxu0 %v384
        %559 = vmatpush2.xpose.msra.mxu0 %v383
        %560 = vmatprep.subr.mxu0 %v380
        %561 = vmatpush2.xpose.msra.mxu0 %v379
        %562 = vmatprep.subr.mxu0 %v376
        %563 = vmatpush2.xpose.msra.mxu0 %v375
        %564 = vmatprep.subr.mxu0 %v372
        %565 = vmatpush2.xpose.msra.mxu0 %v371
        %566 = vmatprep.subr.mxu0 %v368
        %567 = vmatpush2.xpose.msra.mxu0 %v367
        %568 = vmatprep.subr.mxu0 %v364
        %569 = vmatpush2.xpose.msra.mxu0 %v363
        %570 = vmatprep.subr.mxu0 %v360
        %571 = vmatpush2.xpose.msra.mxu0 %v359
        %572 = vmatprep.subr.mxu0 %v356
        %573 = vmatpush2.xpose.msra.mxu0 %v355
        %574 = vmatprep.mubr.f32.mxu0 %v434
        %575 = vmatmul.mubr.f32.gmra.mxu0 %v430
        %v576 = vpop.f32.mrf.mxu0
        %v577 = vadd.f32 %v506, %v576
        %v578 = vpop.f32.mrf.mxu0
        %v579 = vadd.f32 %v508, %v578
        %580 = vdwg.mxu0
        %v583 = vcombine.low %v577, %v579
        %v585 = vunpack.c.l.s4 1966171168
        %v586 = vunpack.c.0.s8 %v585
        %v587 = vlaneseq
        %v588 = vshrl.u32 %v587, 7
        %v589 = vsub.s32 %v586, %v588
        %v590 = vrot.slane %v583, %v589
        %v592 = vunpack.c.l.s4 1966171168
        %v593 = vunpack.c.0.s8 %v592
        %v594 = vlaneseq
        %v595 = vshrl.u32 %v594, 7
        %v596 = vsub.s32 %v593, %v595
        %v597 = vrot.slane %v590, %v596
        %v599 = vadd.f32 %v417, %v597
        %v600 = vlaneseq
        %vm601 = vcmp.ge.s32.totalorder %v600, 0
        %vm602 = vcmp.lt.s32.totalorder %v600, 256
        %vm603 = vmand %vm601, %vm602
        %604 = vst.msk [vmem:[#allocation2] sm:$0x3] %vm603, %v599
        // Predicated region
        $region49: #{tpu_custom_call.1} parent=31 // pred_check
          %p605 = pneg %p279
        $region50: #{tpu_custom_call.1} parent=31 // pred_check_branch
          %607 = sbr.rel (%p605) target = $region52
        $region51: #{tpu_custom_call.1} parent=31 // pred_region
          %v608 = vld [vmem:[#allocation2] sm:$0x3]
          %v609 = vld [vmem:[%s241] sm:$0x3]
          %v610 = vadd.f32 %v608, %v609
          %611 = vst.msk [vmem:[%s268] sm:$0x3] %vm603, %v610
        $region52: #{tpu_custom_call.1} parent=31 // pred_fallthru
          _
        %s612 = sand.u32 %s121, 1
        %s613 = scalar_lea.sflag [#allocation5], %s612
        %s614 = sand.u32 %s121, 1
        %s615 = smul.addr %s614, 2
        %s616 = scalar_lea.vmem [#allocation9], %s615
        // Predicated region
        $region53: #{tpu_custom_call.1} parent=31 // pred_check
          %p617 = pneg %p131
        $region54: #{tpu_custom_call.1} parent=31 // pred_check_branch
          %619 = sbr.rel (%p617) target = $region56
        $region55: #{tpu_custom_call.1} parent=31 // pred_region
          %s620 = smul.u32 2, %s25
          %s622 = ssub.s32 32, 32
          %623 = vsyncadd %s613, %s622
          %s624 = smul.addr %s620, 16
          %s625 = scalar_lea.hbm %s3, %s624
          %s627 = sshll.u32 %s616, 4
          %s628 = int_to_ptr.vmem [resolvable:$true] %s627
          %630 = dma.vmem_to_hbm [thread:$0]  %s628, 32, %s625, %s613
        $region56: #{tpu_custom_call.1} parent=31 // pred_fallthru
          _
      $region32: #{tpu_custom_call.1} parent=5 // pred_fallthru
        _
      %p631 = scmp.le.s32.totalorder 2, %s16
      // Predicated region
      $region57: #{tpu_custom_call.1} parent=5 // pred_check
        %p632 = pneg %p631
      $region58: #{tpu_custom_call.1} parent=5 // pred_check_branch
        %634 = sbr.rel (%p632) target = $region60
      $region59: #{tpu_custom_call.1} parent=5 // pred_region
        %s635 = ssub.s32 %s16, 2
        // Predicated region
        $region61: #{tpu_custom_call.1} parent=59 // pred_check
          %p636 = pneg %p137
        $region62: #{tpu_custom_call.1} parent=59 // pred_check_branch
          %638 = sbr.rel (%p636) target = $region64
        $region63: #{tpu_custom_call.1} parent=59 // pred_region
          %s639 = sand.u32 %s122, 1
          %s640 = scalar_lea.sflag [#allocation5], %s639
          %s641 = sand.u32 %s122, 1
          %s642 = smul.addr %s641, 2
          %s643 = scalar_lea.vmem [#allocation9], %s642
          %644 = dma.done %s640, 32
        $region64: #{tpu_custom_call.1} parent=59 // pred_fallthru
          _
      $region60: #{tpu_custom_call.1} parent=5 // pred_fallthru
        _
    $region6: #{tpu_custom_call.1} parent=1 // loop_footer
      %s20 = sadd.s32 1, %s16
    $region7: #{tpu_custom_call.1} parent=1 // loop_footer_branch
      %15 = sbr.rel target = $region3
    $region8: #{tpu_custom_call.1} parent=1 // loop_exit
      _
    %645 = vsyncpa [#allocation4], 1
    %s646 = scalar_lea.sflag [#allocation4], 1
    %647 = vsyncpa %s646, 1
    %648 = vsyncpa [#allocation7], 1
    %s649 = scalar_lea.sflag [#allocation7], 1
    %650 = vsyncpa %s649, 1
    %651 = vsyncpa [#allocation5], 1
    %s652 = scalar_lea.sflag [#allocation5], 1
    %653 = vsyncpa %s652, 1

</llo_original>
